<compile_context>
chip_gen: v7x
topology: tpu7x:2x2x1
jax: 0.10.0
libtpu: 0.0.40
codegen_flags: <defaults>
</compile_context>

<pallas_src>
import numpy as np
import jax
import jax.numpy as jnp
from jax.experimental import pallas as pl
from jax.experimental.pallas import tpu as pltpu

# ----------------------------- model constants -------------------------------
HID = 256          # decoder LSTM hidden size
EMB = 256          # token embedding size
IO = 512           # io_embed feature size
CTX = 512          # attention context / values size (per head)
G4 = 4 * HID       # 1024 = LSTM gates width
END_TOKEN = 1      # data.replace_pad_with_end target (pad id == -1 here)
NEG_BIG = -1e30    # additive mask value


# ----------------------------- small linear kernel ----------------------------
def _linear_kernel(a_ref, w_ref, b_ref, o_ref):
    o_ref[...] = jnp.dot(a_ref[...].astype(jnp.bfloat16), w_ref[...],
                         preferred_element_type=jnp.float32) + b_ref[...]


def pallas_linear(a, w, b=None):
    """y = a @ w + b.  Whole operands resident in VMEM (M is small here);
    no padded weight copies, bf16 operands / f32 accumulation."""
    M, _ = a.shape
    N = w.shape[1]
    if b is None:
        b = jnp.zeros((N,), jnp.float32)
    return pl.pallas_call(
        _linear_kernel,
        out_shape=jax.ShapeDtypeStruct((M, N), jnp.float32),
    )(a, w.astype(jnp.bfloat16), b.reshape(1, N).astype(jnp.float32))


# ----------------------------- fused decoder kernel ---------------------------
def _make_decoder_kernel(B, P):
    BF = jnp.bfloat16

    def lstm_cell(gates, c_prev):
        i = jax.nn.sigmoid(gates[:, 0 * HID:1 * HID])
        f = jax.nn.sigmoid(gates[:, 1 * HID:2 * HID])
        g = jnp.tanh(gates[:, 2 * HID:3 * HID])
        o = jax.nn.sigmoid(gates[:, 3 * HID:4 * HID])
        c = f * c_prev + i * g
        return o * jnp.tanh(c), c

    def kernel(pre_g0_ref,                                   # (1, BP, 4H) per step
               w_ctx0_ref, w_hh0_ref,                        # LSTM layer 0
               w_ih1_ref, w_hh1_ref, b1_ref,                 # LSTM layer 1
               wq_c_ref, bq_c_ref, cmem_t_ref, cmem_ref, cbias_ref,   # code attn
               wq_t_ref, bq_t_ref, tmem_t_ref, tmem_ref, tbias_ref,   # trace attn
               w_cp_c_ref, w_cp_t_ref, b_cp_ref,             # context_proj
               w_out_ctx_ref, w_out_h_ref,                   # out projection
               logits_ref,                                   # (1, B, V)
               h0_sc, c0_sc, h1_sc, c1_sc, ctx_sc):          # recurrent state
        t = pl.program_id(0)

        @pl.when(t == 0)
        def _():                       # init_state: zero h/c and zero context
            h0_sc[...] = jnp.zeros_like(h0_sc)
            c0_sc[...] = jnp.zeros_like(c0_sc)
            h1_sc[...] = jnp.zeros_like(h1_sc)
            c1_sc[...] = jnp.zeros_like(c1_sc)
            ctx_sc[...] = jnp.zeros_like(ctx_sc)

        # ---- 2-layer LSTM, single timestep ----------------------------------
        # layer 0 input = [emb | io | ctx]; emb/io parts are precomputed in
        # pre_g0, the recurrent parts (ctx of previous step, h0) stay here.
        gates0 = (pre_g0_ref[0]
                  + jnp.dot(ctx_sc[...].astype(BF), w_ctx0_ref[...],
                            preferred_element_type=jnp.float32)
                  + jnp.dot(h0_sc[...].astype(BF), w_hh0_ref[...],
                            preferred_element_type=jnp.float32))
        h0, c0 = lstm_cell(gates0, c0_sc[...])
        h0_sc[...] = h0
        c0_sc[...] = c0

        gates1 = (b1_ref[...]
                  + jnp.dot(h0.astype(BF), w_ih1_ref[...],
                            preferred_element_type=jnp.float32)
                  + jnp.dot(h1_sc[...].astype(BF), w_hh1_ref[...],
                            preferred_element_type=jnp.float32))
        h1, c1 = lstm_cell(gates1, c1_sc[...])
        h1_sc[...] = h1
        c1_sc[...] = c1                                       # decoder_output = h1

        # ---- SimpleSDPAttention (code / trace memories) ----------------------
        # Memories are flattened over (example, position); the additive bias
        # (-1e30) kills positions of other examples and padded positions, so
        # this equals per-example batched scaled-dot-product attention.
        # wq / bq are pre-scaled by 1/sqrt(d) in the wrapper.
        def sdp_attention(wq_ref, bq_ref, mem_t_ref, mem_ref, bias_ref):
            q = (jnp.dot(h1.astype(BF), wq_ref[...],
                         preferred_element_type=jnp.float32) + bq_ref[...])
            scores = jnp.dot(q.astype(BF), mem_t_ref[...],
                             preferred_element_type=jnp.float32) + bias_ref[...]
            m = jnp.max(scores, axis=-1, keepdims=True)
            e = jnp.exp(scores - m)
            inv = pl.reciprocal(jnp.sum(e, axis=-1, keepdims=True), approx=True)
            attn = e * inv
            return jnp.dot(attn.astype(BF), mem_ref[...],
                           preferred_element_type=jnp.float32)   # (BP, CTX)

        code_ctx = sdp_attention(wq_c_ref, bq_c_ref, cmem_t_ref, cmem_ref, cbias_ref)
        trace_ctx = sdp_attention(wq_t_ref, bq_t_ref, tmem_t_ref, tmem_ref, tbias_ref)

        # context_proj(concat([code_ctx, trace_ctx])) as two split dots
        new_ctx = (jnp.dot(code_ctx.astype(BF), w_cp_c_ref[...],
                           preferred_element_type=jnp.float32)
                   + jnp.dot(trace_ctx.astype(BF), w_cp_t_ref[...],
                             preferred_element_type=jnp.float32)
                   + b_cp_ref[...])
        ctx_sc[...] = new_ctx                                   # state for t+1

        # ---- max over pairs, then out projection -----------------------------
        # max(concat([ctx, h]), pairs) == [max(ctx), max(h)]  (elementwise max),
        # so the bias-free out Linear splits across the concat boundary.  Reduce
        # each example's P rows, then one lane-dense (B, V) matmul + block store.
        ctx_rows = [jnp.max(new_ctx[b * P:(b + 1) * P, :], axis=0, keepdims=True)
                    for b in range(B)]
        h_rows = [jnp.max(h1[b * P:(b + 1) * P, :], axis=0, keepdims=True)
                  for b in range(B)]
        ctx_max = jnp.concatenate(ctx_rows, axis=0) if B > 1 else ctx_rows[0]
        h_max = jnp.concatenate(h_rows, axis=0) if B > 1 else h_rows[0]

        logits_ref[0, :, :] = (
            jnp.dot(ctx_max.astype(BF), w_out_ctx_ref[...],
                    preferred_element_type=jnp.float32)
            + jnp.dot(h_max.astype(BF), w_out_h_ref[...],
                      preferred_element_type=jnp.float32))

    return kernel


def pallas_refine_decode(pre_g0, code_mem, code_mem_t, code_bias,
                         trace_mem, trace_mem_t, trace_bias, params, B, P, V):
    T, BP, _ = pre_g0.shape
    BF = jnp.bfloat16
    scale = 1.0 / float(np.sqrt(CTX))   # folded into the query projections

    inputs = [
        pre_g0.astype(jnp.float32),
        params["w_ih0_ctx"].astype(BF),
        params["w_hh0"].astype(BF),
        params["w_ih1"].astype(BF),
        params["w_hh1"].astype(BF),
        params["b1"].reshape(1, G4).astype(jnp.float32),
        (params["wq_code"] * scale).astype(BF),
        (params["bq_code"] * scale).reshape(1, CTX).astype(jnp.float32),
        code_mem_t.astype(BF),
        code_mem.astype(BF),
        code_bias.astype(jnp.float32),
        (params["wq_trace"] * scale).astype(BF),
        (params["bq_trace"] * scale).reshape(1, CTX).astype(jnp.float32),
        trace_mem_t.astype(BF),
        trace_mem.astype(BF),
        trace_bias.astype(jnp.float32),
        params["w_cp_code"].astype(BF),
        params["w_cp_trace"].astype(BF),
        params["b_cp"].reshape(1, CTX).astype(jnp.float32),
        params["w_out_ctx"].astype(BF),
        params["w_out_h"].astype(BF),
    ]

    def const_spec(shape):
        nd = len(shape)
        return pl.BlockSpec(shape, lambda t, nd=nd: (0,) * nd)

    in_specs = [pl.BlockSpec((1, BP, G4), lambda t: (t, 0, 0))]
    in_specs += [const_spec(x.shape) for x in inputs[1:]]

    grid_spec = pltpu.PrefetchScalarGridSpec(
        num_scalar_prefetch=0,
        grid=(T,),
        in_specs=in_specs,
        out_specs=pl.BlockSpec((1, B, V), lambda t: (t, 0, 0)),
        scratch_shapes=[pltpu.VMEM((BP, HID), jnp.float32),   # h0
                        pltpu.VMEM((BP, HID), jnp.float32),   # c0
                        pltpu.VMEM((BP, HID), jnp.float32),   # h1
                        pltpu.VMEM((BP, HID), jnp.float32),   # c1
                        pltpu.VMEM((BP, CTX), jnp.float32)],  # context
    )
    return pl.pallas_call(
        _make_decoder_kernel(B, P),
        out_shape=jax.ShapeDtypeStruct((T, B, V), jnp.float32),
        grid_spec=grid_spec,
        compiler_params=pltpu.CompilerParams(
            dimension_semantics=("arbitrary",),    # T is a recurrence
            vmem_limit_bytes=64 * 1024 * 1024),
    )(*inputs)


# ----------------------------- forward wrapper --------------------------------
def _flat_memory(memory, lengths, B, P):
    """(B,P,S,CTX) memory + (B,P) lengths -> flat mem, its transpose and a
    block-diagonal + length additive bias (0.0 == attendable, -1e30 == masked)."""
    S = memory.shape[2]
    BP = B * P
    mem = memory.reshape(BP * S, CTX)
    mem_t = mem.T                                              # (CTX, BP*S)
    j = jnp.arange(BP * S)
    own = (j[None, :] // S) == jnp.arange(BP)[:, None]
    pos_ok = (j[None, :] % S) < lengths.reshape(BP, 1)
    bias = jnp.where(own & pos_ok, 0.0, NEG_BIG).astype(jnp.float32)  # (BP, BP*S)
    return mem, mem_t, bias


def lgrl_seq_refine_decoder_forward(params, io_embed, code_memory, code_lengths,
                                    trace_memory, trace_lengths, outputs):
    B, P, _ = io_embed.shape
    V = params["w_out_h"].shape[1]

    # outputs -> (decoder inputs, labels); replace_pad_with_end on the inputs
    dec_in = outputs[:, :-1]
    labels = outputs[:, 1:]
    T = dec_in.shape[1]
    tokens = jnp.where(dec_in < 0, END_TOKEN, dec_in)

    # token embedding (single gather; no good Pallas equivalent for table lookup)
    emb = jnp.take(params["embed"], tokens.reshape(-1), axis=0)        # (B*T, EMB)

    # Hoist the time-invariant layer-0 gate pre-activation out of the recurrence:
    #   pre_g0[t, b*P+p] = emb[b,t] @ W_e + io[b,p] @ W_io + (b_ih0 + b_hh0)
    emb_gates = pallas_linear(emb, params["w_ih0_emb"], params["b0"])  # (B*T, 4H)
    io_gates = pallas_linear(io_embed.reshape(B * P, IO),
                             params["w_ih0_io"])                       # (B*P, 4H)
    pre_g0 = (emb_gates.reshape(B, T, 1, G4).transpose(1, 0, 2, 3)
              + io_gates.reshape(1, B, P, G4)).reshape(T, B * P, G4)

    # prepare_memory: padded memories + additive attention masks from lengths
    code_mem, code_mem_t, code_bias = _flat_memory(code_memory, code_lengths, B, P)
    trace_mem, trace_mem_t, trace_bias = _flat_memory(trace_memory, trace_lengths, B, P)

    logits_tbv = pallas_refine_decode(pre_g0,
                                      code_mem, code_mem_t, code_bias,
                                      trace_mem, trace_mem_t, trace_bias,
                                      params, B, P, V)
    all_logits = jnp.transpose(logits_tbv, (1, 0, 2))                  # (B, T, V)
    return all_logits, labels


# ----------------------------- parameter init ---------------------------------
def init_params(key, vocab_total):
    ks = iter(jax.random.split(key, 32))

    def nrm(shape, s=0.05):
        return s * jax.random.normal(next(ks), shape, jnp.float32)

    return {
        "embed": nrm((vocab_total, EMB), 0.5),
        # decoder LSTM layer 0; W_ih split over [emb | io | ctx] input slices
        "w_ih0_emb": nrm((EMB, G4)),
        "w_ih0_io": nrm((IO, G4)),
        "w_ih0_ctx": nrm((CTX, G4)),
        "w_hh0": nrm((HID, G4)),
        "b0": nrm((G4,)),                    # b_ih0 + b_hh0
        # decoder LSTM layer 1
        "w_ih1": nrm((HID, G4)),
        "w_hh1": nrm((HID, G4)),
        "b1": nrm((G4,)),                    # b_ih1 + b_hh1
        # SimpleSDPAttention query projections (256 -> 512)
        "wq_code": nrm((HID, CTX)),
        "bq_code": nrm((CTX,)),
        "wq_trace": nrm((HID, CTX)),
        "bq_trace": nrm((CTX,)),
        # context_proj: Linear(1024, 512), split over [code_ctx | trace_ctx]
        "w_cp_code": nrm((CTX, CTX)),
        "w_cp_trace": nrm((CTX, CTX)),
        "b_cp": nrm((CTX,)),
        # out: Linear(768, V, bias=False), split over [context | decoder_output]
        "w_out_ctx": nrm((CTX, vocab_total)),
        "w_out_h": nrm((HID, vocab_total)),
    }


# ----------------------------- main --------------------------------------------
if __name__ == "__main__":
    key = jax.random.PRNGKey(0)
    kp, kd = jax.random.split(key)

    B, P = 2, 4            # batch, I/O pairs per example
    V = 128                # vocab_size + num_placeholders
    Sc, St = 16, 16        # padded code / trace memory lengths
    L = 9                  # outputs length (T = 8 decode steps)

    params = init_params(kp, V)

    kds = jax.random.split(kd, 6)
    io_embed = 0.5 * jax.random.normal(kds[0], (B, P, IO), jnp.float32)
    code_memory = 0.5 * jax.random.normal(kds[1], (B, P, Sc, CTX), jnp.float32)
    trace_memory = 0.5 * jax.random.normal(kds[2], (B, P, St, CTX), jnp.float32)
    code_lengths = jax.random.randint(kds[3], (B, P), 1, Sc + 1)
    trace_lengths = jax.random.randint(kds[4], (B, P), 1, St + 1)
    outputs = jax.random.randint(kds[5], (B, L), 0, V)
    outputs = outputs.at[1, 3].set(-1)       # exercise replace_pad_with_end

    all_logits, labels = lgrl_seq_refine_decoder_forward(
        params, io_embed, code_memory, code_lengths,
        trace_memory, trace_lengths, outputs)

    jax.block_until_ready((all_logits, labels))
    T = L - 1
    assert all_logits.shape == (B, T, V), all_logits.shape
    assert labels.shape == (B, T), labels.shape
    assert bool(jnp.all(jnp.isfinite(all_logits)))
    print("KERNEL_OK")
</pallas_src>

<mosaic_0001>
module attributes {stable_mosaic.version = 11 : i64} {
  func.func @_linear_kernel(%arg0: memref<16x256xf32, #tpu.memory_space<vmem>>, %arg1: memref<256x1024xbf16, #tpu.memory_space<vmem>>, %arg2: memref<1x1024xf32, #tpu.memory_space<vmem>>, %arg3: memref<16x1024xf32, #tpu.memory_space<vmem>>) attributes {dimension_semantics = [], scalar_prefetch = 0 : i64, scratch_operands = 0 : i64, tpu.core_type = #tpu.core_type<tc>} {
    %c0 = arith.constant 0 : index
    %c0_0 = arith.constant 0 : index
    %0 = vector.load %arg0[%c0, %c0_0] : memref<16x256xf32, #tpu.memory_space<vmem>>, vector<16x256xf32>
    %1 = arith.truncf %0 : vector<16x256xf32> to vector<16x256xbf16>
    %c0_1 = arith.constant 0 : index
    %c0_2 = arith.constant 0 : index
    %2 = vector.load %arg1[%c0_1, %c0_2] : memref<256x1024xbf16, #tpu.memory_space<vmem>>, vector<256x1024xbf16>
    %cst = arith.constant dense<0.000000e+00> : vector<16x1024xf32>
    %3 = tpu.matmul %1, %2, %cst {dimension_numbers = #tpu.dot_dimension_numbers<[1], [0], [0], [1], [0, 0, 1, 1], [], []>} : vector<16x256xbf16>, vector<256x1024xbf16>, vector<16x1024xf32> -> vector<16x1024xf32>
    %c0_3 = arith.constant 0 : index
    %c0_4 = arith.constant 0 : index
    %4 = vector.load %arg2[%c0_3, %c0_4] : memref<1x1024xf32, #tpu.memory_space<vmem>>, vector<1x1024xf32>
    %5 = vector.broadcast %4 : vector<1x1024xf32> to vector<16x1024xf32>
    %6 = arith.addf %3, %5 : vector<16x1024xf32>
    %c0_5 = arith.constant 0 : index
    %c0_6 = arith.constant 0 : index
    %7 = vector.load %arg3[%c0_5, %c0_6] : memref<16x1024xf32, #tpu.memory_space<vmem>>, vector<16x1024xf32>
    tpu.vector_store %arg3[%c0_5, %c0_6], %6 {strides = array<i32>} : memref<16x1024xf32, #tpu.memory_space<vmem>>, vector<16x1024xf32>,
    return
  }
}

</mosaic_0001>

<llo_original>
// kernel: tpu_custom_call.1
$region0: #{tpu_custom_call.1}
  #allocation0 [shape = 'u32[]', space=smem, size = 0x4, offset = 0x4, fixed_abs, tag = 'smem constant byte address 0x4 - core index']
  #allocation1 [shape = 'u32[144,128]{1,0:T(1,128)}', space=vmem, size = 0x12000, scoped, tag = 'internal scratch']
  %s0 = inlined_call_operand.hbm [shape: f32[16,256], index: 0, kind: input, shape index: {}]
  %s1 = inlined_call_operand.hbm [shape: bf16[256,1024], index: 1, kind: input, shape index: {}]
  %s2 = inlined_call_operand.hbm [shape: f32[1,1024], index: 2, kind: input, shape index: {}]
  %s3 = inlined_call_operand.hbm [shape: f32[16,1024], index: 3, kind: output, shape index: {}]
  %s4 = sld [smem:[#allocation0]]
  $region34: #{tpu_custom_call.1} parent=0
    _
  %s6 = ssub.s32 1, %s4
  %s7 = scalar_select 0, %s6, %s4
  $region1: #{tpu_custom_call.1} parent=0
    #allocation2 [shape = 'u8[16384]{0}', space=vmem, size = 0x4000, scoped, tag = 'input window, operand 0, single buffered']
    #allocation3 [shape = 's32[1]{0}', space=sflag, size = 0x4, scoped, tag = 'scoped memory for tpu_custom_call.1']
    #allocation4 [shape = 's32[1]{0}', space=sflag, size = 0x4, scoped, tag = 'scoped memory for tpu_custom_call.1']
    #allocation5 [shape = 'u8[524288]{0}', space=vmem, size = 0x80000, scoped, tag = 'input window, operand 1, single buffered']
    #allocation6 [shape = 's32[1]{0}', space=sflag, size = 0x4, scoped, tag = 'scoped memory for tpu_custom_call.1']
    #allocation7 [shape = 'u8[4096]{0}', space=vmem, size = 0x1000, scoped, tag = 'input window, operand 2, single buffered']
    #allocation8 [shape = 'u8[65536]{0}', space=vmem, size = 0x10000, scoped, tag = 'output window, operand 0, single buffered']
    %8 = vsyncpa [#allocation3], 0
    %9 = vsyncpa [#allocation6], 0
    %10 = vsyncpa [#allocation4], 0
    // Predicated region
    $region2: #{tpu_custom_call.1} parent=1 // pred_check
      _
    $region3: #{tpu_custom_call.1} parent=1 // pred_check_branch
      %12 = sbr.rel (0) target = $region5
    $region4: #{tpu_custom_call.1} parent=1 // pred_region
      %s14 = ssub.s32 512, 512
      %15 = vsyncadd [#allocation3], %s14
      %s16 = sshll.u32 [#allocation2], 4
      %s17 = int_to_ptr.vmem [resolvable:$true] %s16
      %22 = dma.hbm_to_vmem [thread:$0]  %s0, 512, %s17, [#allocation3], 256, 256, 16
    $region5: #{tpu_custom_call.1} parent=1 // pred_fallthru
      _
    // Predicated region
    $region6: #{tpu_custom_call.1} parent=1 // pred_check
      _
    $region7: #{tpu_custom_call.1} parent=1 // pred_check_branch
      %24 = sbr.rel (0) target = $region9
    $region8: #{tpu_custom_call.1} parent=1 // pred_region
      %s26 = ssub.s32 16384, 16384
      %27 = vsyncadd [#allocation6], %s26
      %s28 = sshll.u32 [#allocation5], 4
      %s29 = int_to_ptr.vmem [resolvable:$true] %s28
      %34 = dma.hbm_to_vmem [thread:$0]  %s1, 16384, %s29, [#allocation6], 512, 512, 32
    $region9: #{tpu_custom_call.1} parent=1 // pred_fallthru
      _
    // Predicated region
    $region10: #{tpu_custom_call.1} parent=1 // pred_check
      _
    $region11: #{tpu_custom_call.1} parent=1 // pred_check_branch
      %36 = sbr.rel (0) target = $region13
    $region12: #{tpu_custom_call.1} parent=1 // pred_region
      %s38 = ssub.s32 128, 128
      %39 = vsyncadd [#allocation6], %s38
      %s41 = sshll.u32 [#allocation7], 4
      %s42 = int_to_ptr.vmem [resolvable:$true] %s41
      %44 = dma.hbm_to_vmem [thread:$0]  %s2, 128, %s42, [#allocation6]
    $region13: #{tpu_custom_call.1} parent=1 // pred_fallthru
      _
    // Predicated region
    $region14: #{tpu_custom_call.1} parent=1 // pred_check
      _
    $region15: #{tpu_custom_call.1} parent=1 // pred_check_branch
      %46 = sbr.rel (0) target = $region17
    $region16: #{tpu_custom_call.1} parent=1 // pred_region
      %47 = dma.done [#allocation3], 512
    $region17: #{tpu_custom_call.1} parent=1 // pred_fallthru
      _
    // Predicated region
    $region18: #{tpu_custom_call.1} parent=1 // pred_check
      _
    $region19: #{tpu_custom_call.1} parent=1 // pred_check_branch
      %49 = sbr.rel (0) target = $region21
    $region20: #{tpu_custom_call.1} parent=1 // pred_region
      %50 = dma.done [#allocation6], 16384
    $region21: #{tpu_custom_call.1} parent=1 // pred_fallthru
      _
    // Predicated region
    $region22: #{tpu_custom_call.1} parent=1 // pred_check
      _
    $region23: #{tpu_custom_call.1} parent=1 // pred_check_branch
      %52 = sbr.rel (0) target = $region25
    $region24: #{tpu_custom_call.1} parent=1 // pred_region
      %53 = dma.done [#allocation6], 128
    $region25: #{tpu_custom_call.1} parent=1 // pred_fallthru
      _
    %v54 = vld [vmem:[#allocation2] sm:$0xff]
    %v55 = vld [vmem:[#allocation2 + $0x8] sm:$0xff]
    %v56 = vld [vmem:[#allocation2 + $0x10] sm:$0xff]
    %v57 = vld [vmem:[#allocation2 + $0x18] sm:$0xff]
    %v58 = vpack.c.bf16 %v56, %v54
    %v59 = vpack.c.bf16 %v57, %v55
    %v60 = vld [vmem:[#allocation5] sm:$0xff]
    %v61 = vld [vmem:[#allocation5 + $0x8] sm:$0xff]
    %v62 = vld [vmem:[#allocation5 + $0x10] sm:$0xff]
    %v63 = vld [vmem:[#allocation5 + $0x18] sm:$0xff]
    %v64 = vld [vmem:[#allocation5 + $0x20] sm:$0xff]
    %v65 = vld [vmem:[#allocation5 + $0x28] sm:$0xff]
    %v66 = vld [vmem:[#allocation5 + $0x30] sm:$0xff]
    %v67 = vld [vmem:[#allocation5 + $0x38] sm:$0xff]
    %v68 = vld [vmem:[#allocation5 + $0x40] sm:$0xff]
    %v69 = vld [vmem:[#allocation5 + $0x48] sm:$0xff]
    %v70 = vld [vmem:[#allocation5 + $0x50] sm:$0xff]
    %v71 = vld [vmem:[#allocation5 + $0x58] sm:$0xff]
    %v72 = vld [vmem:[#allocation5 + $0x60] sm:$0xff]
    %v73 = vld [vmem:[#allocation5 + $0x68] sm:$0xff]
    %v74 = vld [vmem:[#allocation5 + $0x70] sm:$0xff]
    %v75 = vld [vmem:[#allocation5 + $0x78] sm:$0xff]
    %v76 = vld [vmem:[#allocation5 + $0x80] sm:$0xff]
    %v77 = vld [vmem:[#allocation5 + $0x88] sm:$0xff]
    %v78 = vld [vmem:[#allocation5 + $0x90] sm:$0xff]
    %v79 = vld [vmem:[#allocation5 + $0x98] sm:$0xff]
    %v80 = vld [vmem:[#allocation5 + $0xa0] sm:$0xff]
    %v81 = vld [vmem:[#allocation5 + $0xa8] sm:$0xff]
    %v82 = vld [vmem:[#allocation5 + $0xb0] sm:$0xff]
    %v83 = vld [vmem:[#allocation5 + $0xb8] sm:$0xff]
    %v84 = vld [vmem:[#allocation5 + $0xc0] sm:$0xff]
    %v85 = vld [vmem:[#allocation5 + $0xc8] sm:$0xff]
    %v86 = vld [vmem:[#allocation5 + $0xd0] sm:$0xff]
    %v87 = vld [vmem:[#allocation5 + $0xd8] sm:$0xff]
    %v88 = vld [vmem:[#allocation5 + $0xe0] sm:$0xff]
    %v89 = vld [vmem:[#allocation5 + $0xe8] sm:$0xff]
    %v90 = vld [vmem:[#allocation5 + $0xf0] sm:$0xff]
    %v91 = vld [vmem:[#allocation5 + $0xf8] sm:$0xff]
    %v92 = vld [vmem:[#allocation5 + $0x100] sm:$0xff]
    %v93 = vld [vmem:[#allocation5 + $0x108] sm:$0xff]
    %v94 = vld [vmem:[#allocation5 + $0x110] sm:$0xff]
    %v95 = vld [vmem:[#allocation5 + $0x118] sm:$0xff]
    %v96 = vld [vmem:[#allocation5 + $0x120] sm:$0xff]
    %v97 = vld [vmem:[#allocation5 + $0x128] sm:$0xff]
    %v98 = vld [vmem:[#allocation5 + $0x130] sm:$0xff]
    %v99 = vld [vmem:[#allocation5 + $0x138] sm:$0xff]
    %v100 = vld [vmem:[#allocation5 + $0x140] sm:$0xff]
    %v101 = vld [vmem:[#allocation5 + $0x148] sm:$0xff]
    %v102 = vld [vmem:[#allocation5 + $0x150] sm:$0xff]
    %v103 = vld [vmem:[#allocation5 + $0x158] sm:$0xff]
    %v104 = vld [vmem:[#allocation5 + $0x160] sm:$0xff]
    %v105 = vld [vmem:[#allocation5 + $0x168] sm:$0xff]
    %v106 = vld [vmem:[#allocation5 + $0x170] sm:$0xff]
    %v107 = vld [vmem:[#allocation5 + $0x178] sm:$0xff]
    %v108 = vld [vmem:[#allocation5 + $0x180] sm:$0xff]
    %v109 = vld [vmem:[#allocation5 + $0x188] sm:$0xff]
    %v110 = vld [vmem:[#allocation5 + $0x190] sm:$0xff]
    %v111 = vld [vmem:[#allocation5 + $0x198] sm:$0xff]
    %v112 = vld [vmem:[#allocation5 + $0x1a0] sm:$0xff]
    %v113 = vld [vmem:[#allocation5 + $0x1a8] sm:$0xff]
    %v114 = vld [vmem:[#allocation5 + $0x1b0] sm:$0xff]
    %v115 = vld [vmem:[#allocation5 + $0x1b8] sm:$0xff]
    %v116 = vld [vmem:[#allocation5 + $0x1c0] sm:$0xff]
    %v117 = vld [vmem:[#allocation5 + $0x1c8] sm:$0xff]
    %v118 = vld [vmem:[#allocation5 + $0x1d0] sm:$0xff]
    %v119 = vld [vmem:[#allocation5 + $0x1d8] sm:$0xff]
    %v120 = vld [vmem:[#allocation5 + $0x1e0] sm:$0xff]
    %v121 = vld [vmem:[#allocation5 + $0x1e8] sm:$0xff]
    %v122 = vld [vmem:[#allocation5 + $0x1f0] sm:$0xff]
    %v123 = vld [vmem:[#allocation5 + $0x1f8] sm:$0xff]
    %v124 = vld [vmem:[#allocation5 + $0x200] sm:$0xff]
    %v125 = vld [vmem:[#allocation5 + $0x208] sm:$0xff]
    %v126 = vld [vmem:[#allocation5 + $0x210] sm:$0xff]
    %v127 = vld [vmem:[#allocation5 + $0x218] sm:$0xff]
    %v128 = vld [vmem:[#allocation5 + $0x220] sm:$0xff]
    %v129 = vld [vmem:[#allocation5 + $0x228] sm:$0xff]
    %v130 = vld [vmem:[#allocation5 + $0x230] sm:$0xff]
    %v131 = vld [vmem:[#allocation5 + $0x238] sm:$0xff]
    %v132 = vld [vmem:[#allocation5 + $0x240] sm:$0xff]
    %v133 = vld [vmem:[#allocation5 + $0x248] sm:$0xff]
    %v134 = vld [vmem:[#allocation5 + $0x250] sm:$0xff]
    %v135 = vld [vmem:[#allocation5 + $0x258] sm:$0xff]
    %v136 = vld [vmem:[#allocation5 + $0x260] sm:$0xff]
    %v137 = vld [vmem:[#allocation5 + $0x268] sm:$0xff]
    %v138 = vld [vmem:[#allocation5 + $0x270] sm:$0xff]
    %v139 = vld [vmem:[#allocation5 + $0x278] sm:$0xff]
    %v140 = vld [vmem:[#allocation5 + $0x280] sm:$0xff]
    %v141 = vld [vmem:[#allocation5 + $0x288] sm:$0xff]
    %v142 = vld [vmem:[#allocation5 + $0x290] sm:$0xff]
    %v143 = vld [vmem:[#allocation5 + $0x298] sm:$0xff]
    %v144 = vld [vmem:[#allocation5 + $0x2a0] sm:$0xff]
    %v145 = vld [vmem:[#allocation5 + $0x2a8] sm:$0xff]
    %v146 = vld [vmem:[#allocation5 + $0x2b0] sm:$0xff]
    %v147 = vld [vmem:[#allocation5 + $0x2b8] sm:$0xff]
    %v148 = vld [vmem:[#allocation5 + $0x2c0] sm:$0xff]
    %v149 = vld [vmem:[#allocation5 + $0x2c8] sm:$0xff]
    %v150 = vld [vmem:[#allocation5 + $0x2d0] sm:$0xff]
    %v151 = vld [vmem:[#allocation5 + $0x2d8] sm:$0xff]
    %v152 = vld [vmem:[#allocation5 + $0x2e0] sm:$0xff]
    %v153 = vld [vmem:[#allocation5 + $0x2e8] sm:$0xff]
    %v154 = vld [vmem:[#allocation5 + $0x2f0] sm:$0xff]
    %v155 = vld [vmem:[#allocation5 + $0x2f8] sm:$0xff]
    %v156 = vld [vmem:[#allocation5 + $0x300] sm:$0xff]
    %v157 = vld [vmem:[#allocation5 + $0x308] sm:$0xff]
    %v158 = vld [vmem:[#allocation5 + $0x310] sm:$0xff]
    %v159 = vld [vmem:[#allocation5 + $0x318] sm:$0xff]
    %v160 = vld [vmem:[#allocation5 + $0x320] sm:$0xff]
    %v161 = vld [vmem:[#allocation5 + $0x328] sm:$0xff]
    %v162 = vld [vmem:[#allocation5 + $0x330] sm:$0xff]
    %v163 = vld [vmem:[#allocation5 + $0x338] sm:$0xff]
    %v164 = vld [vmem:[#allocation5 + $0x340] sm:$0xff]
    %v165 = vld [vmem:[#allocation5 + $0x348] sm:$0xff]
    %v166 = vld [vmem:[#allocation5 + $0x350] sm:$0xff]
    %v167 = vld [vmem:[#allocation5 + $0x358] sm:$0xff]
    %v168 = vld [vmem:[#allocation5 + $0x360] sm:$0xff]
    %v169 = vld [vmem:[#allocation5 + $0x368] sm:$0xff]
    %v170 = vld [vmem:[#allocation5 + $0x370] sm:$0xff]
    %v171 = vld [vmem:[#allocation5 + $0x378] sm:$0xff]
    %v172 = vld [vmem:[#allocation5 + $0x380] sm:$0xff]
    %v173 = vld [vmem:[#allocation5 + $0x388] sm:$0xff]
    %v174 = vld [vmem:[#allocation5 + $0x390] sm:$0xff]
    %v175 = vld [vmem:[#allocation5 + $0x398] sm:$0xff]
    %v176 = vld [vmem:[#allocation5 + $0x3a0] sm:$0xff]
    %v177 = vld [vmem:[#allocation5 + $0x3a8] sm:$0xff]
    %v178 = vld [vmem:[#allocation5 + $0x3b0] sm:$0xff]
    %v179 = vld [vmem:[#allocation5 + $0x3b8] sm:$0xff]
    %v180 = vld [vmem:[#allocation5 + $0x3c0] sm:$0xff]
    %v181 = vld [vmem:[#allocation5 + $0x3c8] sm:$0xff]
    %v182 = vld [vmem:[#allocation5 + $0x3d0] sm:$0xff]
    %v183 = vld [vmem:[#allocation5 + $0x3d8] sm:$0xff]
    %v184 = vld [vmem:[#allocation5 + $0x3e0] sm:$0xff]
    %v185 = vld [vmem:[#allocation5 + $0x3e8] sm:$0xff]
    %v186 = vld [vmem:[#allocation5 + $0x3f0] sm:$0xff]
    %v187 = vld [vmem:[#allocation5 + $0x3f8] sm:$0xff]
    %v188 = vld [vmem:[#allocation7] sm:$0xff]
    %v190 = vlaneseq
    %v191 = vshrl.u32 %v190, 7
    %v192 = vsub.s32 0, %v191
    %v193 = vrot.slane %v188, %v192
    %v194 = vlaneseq
    %v195 = vshrl.u32 %v194, 7
    %v196 = vsub.s32 1, %v195
    %v197 = vrot.slane %v188, %v196
    %v198 = vlaneseq
    %v199 = vshrl.u32 %v198, 7
    %v200 = vsub.s32 2, %v199
    %v201 = vrot.slane %v188, %v200
    %v202 = vlaneseq
    %v203 = vshrl.u32 %v202, 7
    %v204 = vsub.s32 3, %v203
    %v205 = vrot.slane %v188, %v204
    %v206 = vlaneseq
    %v207 = vshrl.u32 %v206, 7
    %v208 = vsub.s32 4, %v207
    %v209 = vrot.slane %v188, %v208
    %v210 = vlaneseq
    %v211 = vshrl.u32 %v210, 7
    %v212 = vsub.s32 5, %v211
    %v213 = vrot.slane %v188, %v212
    %v214 = vlaneseq
    %v215 = vshrl.u32 %v214, 7
    %v216 = vsub.s32 6, %v215
    %v217 = vrot.slane %v188, %v216
    %v218 = vlaneseq
    %v219 = vshrl.u32 %v218, 7
    %v220 = vsub.s32 7, %v219
    %v221 = vrot.slane %v188, %v220
    %v358 = vunpack.c.l.b16 %v60
    %v359 = vunpack.c.h.b16 %v60
    %v360 = vunpack.c.l.b16 %v61
    %v361 = vunpack.c.h.b16 %v61
    %v362 = vunpack.c.l.b16 %v62
    %v363 = vunpack.c.h.b16 %v62
    %v364 = vunpack.c.l.b16 %v63
    %v365 = vunpack.c.h.b16 %v63
    %v366 = vunpack.c.l.b16 %v64
    %v367 = vunpack.c.h.b16 %v64
    %v368 = vunpack.c.l.b16 %v65
    %v369 = vunpack.c.h.b16 %v65
    %v370 = vunpack.c.l.b16 %v66
    %v371 = vunpack.c.h.b16 %v66
    %v372 = vunpack.c.l.b16 %v67
    %v373 = vunpack.c.h.b16 %v67
    %v374 = vunpack.c.l.b16 %v68
    %v375 = vunpack.c.h.b16 %v68
    %v376 = vunpack.c.l.b16 %v69
    %v377 = vunpack.c.h.b16 %v69
    %v378 = vunpack.c.l.b16 %v70
    %v379 = vunpack.c.h.b16 %v70
    %v380 = vunpack.c.l.b16 %v71
    %v381 = vunpack.c.h.b16 %v71
    %v382 = vunpack.c.l.b16 %v72
    %v383 = vunpack.c.h.b16 %v72
    %v384 = vunpack.c.l.b16 %v73
    %v385 = vunpack.c.h.b16 %v73
    %v386 = vunpack.c.l.b16 %v74
    %v387 = vunpack.c.h.b16 %v74
    %v388 = vunpack.c.l.b16 %v75
    %v389 = vunpack.c.h.b16 %v75
    %v390 = vunpack.c.l.b16 %v76
    %v391 = vunpack.c.h.b16 %v76
    %v392 = vunpack.c.l.b16 %v77
    %v393 = vunpack.c.h.b16 %v77
    %v394 = vunpack.c.l.b16 %v78
    %v395 = vunpack.c.h.b16 %v78
    %v396 = vunpack.c.l.b16 %v79
    %v397 = vunpack.c.h.b16 %v79
    %v398 = vunpack.c.l.b16 %v80
    %v399 = vunpack.c.h.b16 %v80
    %v400 = vunpack.c.l.b16 %v81
    %v401 = vunpack.c.h.b16 %v81
    %v402 = vunpack.c.l.b16 %v82
    %v403 = vunpack.c.h.b16 %v82
    %v404 = vunpack.c.l.b16 %v83
    %v405 = vunpack.c.h.b16 %v83
    %v406 = vunpack.c.l.b16 %v84
    %v407 = vunpack.c.h.b16 %v84
    %v408 = vunpack.c.l.b16 %v85
    %v409 = vunpack.c.h.b16 %v85
    %v410 = vunpack.c.l.b16 %v86
    %v411 = vunpack.c.h.b16 %v86
    %v412 = vunpack.c.l.b16 %v87
    %v413 = vunpack.c.h.b16 %v87
    %v414 = vunpack.c.l.b16 %v88
    %v415 = vunpack.c.h.b16 %v88
    %v416 = vunpack.c.l.b16 %v89
    %v417 = vunpack.c.h.b16 %v89
    %v418 = vunpack.c.l.b16 %v90
    %v419 = vunpack.c.h.b16 %v90
    %v420 = vunpack.c.l.b16 %v91
    %v421 = vunpack.c.h.b16 %v91
    %v422 = vunpack.c.l.b16 %v92
    %v423 = vunpack.c.h.b16 %v92
    %v424 = vunpack.c.l.b16 %v93
    %v425 = vunpack.c.h.b16 %v93
    %v426 = vunpack.c.l.b16 %v94
    %v427 = vunpack.c.h.b16 %v94
    %v428 = vunpack.c.l.b16 %v95
    %v429 = vunpack.c.h.b16 %v95
    %v430 = vunpack.c.l.b16 %v96
    %v431 = vunpack.c.h.b16 %v96
    %v432 = vunpack.c.l.b16 %v97
    %v433 = vunpack.c.h.b16 %v97
    %v434 = vunpack.c.l.b16 %v98
    %v435 = vunpack.c.h.b16 %v98
    %v436 = vunpack.c.l.b16 %v99
    %v437 = vunpack.c.h.b16 %v99
    %v438 = vunpack.c.l.b16 %v100
    %v439 = vunpack.c.h.b16 %v100
    %v440 = vunpack.c.l.b16 %v101
    %v441 = vunpack.c.h.b16 %v101
    %v442 = vunpack.c.l.b16 %v102
    %v443 = vunpack.c.h.b16 %v102
    %v444 = vunpack.c.l.b16 %v103
    %v445 = vunpack.c.h.b16 %v103
    %v446 = vunpack.c.l.b16 %v104
    %v447 = vunpack.c.h.b16 %v104
    %v448 = vunpack.c.l.b16 %v105
    %v449 = vunpack.c.h.b16 %v105
    %v450 = vunpack.c.l.b16 %v106
    %v451 = vunpack.c.h.b16 %v106
    %v452 = vunpack.c.l.b16 %v107
    %v453 = vunpack.c.h.b16 %v107
    %v454 = vunpack.c.l.b16 %v108
    %v455 = vunpack.c.h.b16 %v108
    %v456 = vunpack.c.l.b16 %v109
    %v457 = vunpack.c.h.b16 %v109
    %v458 = vunpack.c.l.b16 %v110
    %v459 = vunpack.c.h.b16 %v110
    %v460 = vunpack.c.l.b16 %v111
    %v461 = vunpack.c.h.b16 %v111
    %v462 = vunpack.c.l.b16 %v112
    %v463 = vunpack.c.h.b16 %v112
    %v464 = vunpack.c.l.b16 %v113
    %v465 = vunpack.c.h.b16 %v113
    %v466 = vunpack.c.l.b16 %v114
    %v467 = vunpack.c.h.b16 %v114
    %v468 = vunpack.c.l.b16 %v115
    %v469 = vunpack.c.h.b16 %v115
    %v470 = vunpack.c.l.b16 %v116
    %v471 = vunpack.c.h.b16 %v116
    %v472 = vunpack.c.l.b16 %v117
    %v473 = vunpack.c.h.b16 %v117
    %v474 = vunpack.c.l.b16 %v118
    %v475 = vunpack.c.h.b16 %v118
    %v476 = vunpack.c.l.b16 %v119
    %v477 = vunpack.c.h.b16 %v119
    %v478 = vunpack.c.l.b16 %v120
    %v479 = vunpack.c.h.b16 %v120
    %v480 = vunpack.c.l.b16 %v121
    %v481 = vunpack.c.h.b16 %v121
    %v482 = vunpack.c.l.b16 %v122
    %v483 = vunpack.c.h.b16 %v122
    %v484 = vunpack.c.l.b16 %v123
    %v485 = vunpack.c.h.b16 %v123
    %v486 = vunpack.c.l.b16 %v124
    %v487 = vunpack.c.h.b16 %v124
    %v488 = vunpack.c.l.b16 %v125
    %v489 = vunpack.c.h.b16 %v125
    %v490 = vunpack.c.l.b16 %v126
    %v491 = vunpack.c.h.b16 %v126
    %v492 = vunpack.c.l.b16 %v127
    %v493 = vunpack.c.h.b16 %v127
    %v494 = vunpack.c.l.b16 %v128
    %v495 = vunpack.c.h.b16 %v128
    %v496 = vunpack.c.l.b16 %v129
    %v497 = vunpack.c.h.b16 %v129
    %v498 = vunpack.c.l.b16 %v130
    %v499 = vunpack.c.h.b16 %v130
    %v500 = vunpack.c.l.b16 %v131
    %v501 = vunpack.c.h.b16 %v131
    %v502 = vunpack.c.l.b16 %v132
    %v503 = vunpack.c.h.b16 %v132
    %v504 = vunpack.c.l.b16 %v133
    %v505 = vunpack.c.h.b16 %v133
    %v506 = vunpack.c.l.b16 %v134
    %v507 = vunpack.c.h.b16 %v134
    %v508 = vunpack.c.l.b16 %v135
    %v509 = vunpack.c.h.b16 %v135
    %v510 = vunpack.c.l.b16 %v136
    %v511 = vunpack.c.h.b16 %v136
    %v512 = vunpack.c.l.b16 %v137
    %v513 = vunpack.c.h.b16 %v137
    %v514 = vunpack.c.l.b16 %v138
    %v515 = vunpack.c.h.b16 %v138
    %v516 = vunpack.c.l.b16 %v139
    %v517 = vunpack.c.h.b16 %v139
    %v518 = vunpack.c.l.b16 %v140
    %v519 = vunpack.c.h.b16 %v140
    %v520 = vunpack.c.l.b16 %v141
    %v521 = vunpack.c.h.b16 %v141
    %v522 = vunpack.c.l.b16 %v142
    %v523 = vunpack.c.h.b16 %v142
    %v524 = vunpack.c.l.b16 %v143
    %v525 = vunpack.c.h.b16 %v143
    %v526 = vunpack.c.l.b16 %v144
    %v527 = vunpack.c.h.b16 %v144
    %v528 = vunpack.c.l.b16 %v145
    %v529 = vunpack.c.h.b16 %v145
    %v530 = vunpack.c.l.b16 %v146
    %v531 = vunpack.c.h.b16 %v146
    %v532 = vunpack.c.l.b16 %v147
    %v533 = vunpack.c.h.b16 %v147
    %v534 = vunpack.c.l.b16 %v148
    %v535 = vunpack.c.h.b16 %v148
    %v536 = vunpack.c.l.b16 %v149
    %v537 = vunpack.c.h.b16 %v149
    %v538 = vunpack.c.l.b16 %v150
    %v539 = vunpack.c.h.b16 %v150
    %v540 = vunpack.c.l.b16 %v151
    %v541 = vunpack.c.h.b16 %v151
    %v542 = vunpack.c.l.b16 %v152
    %v543 = vunpack.c.h.b16 %v152
    %v544 = vunpack.c.l.b16 %v153
    %v545 = vunpack.c.h.b16 %v153
    %v546 = vunpack.c.l.b16 %v154
    %v547 = vunpack.c.h.b16 %v154
    %v548 = vunpack.c.l.b16 %v155
    %v549 = vunpack.c.h.b16 %v155
    %v550 = vunpack.c.l.b16 %v156
    %v551 = vunpack.c.h.b16 %v156
    %v552 = vunpack.c.l.b16 %v157
    %v553 = vunpack.c.h.b16 %v157
    %v554 = vunpack.c.l.b16 %v158
    %v555 = vunpack.c.h.b16 %v158
    %v556 = vunpack.c.l.b16 %v159
    %v557 = vunpack.c.h.b16 %v159
    %v558 = vunpack.c.l.b16 %v160
    %v559 = vunpack.c.h.b16 %v160
    %v560 = vunpack.c.l.b16 %v161
    %v561 = vunpack.c.h.b16 %v161
    %v562 = vunpack.c.l.b16 %v162
    %v563 = vunpack.c.h.b16 %v162
    %v564 = vunpack.c.l.b16 %v163
    %v565 = vunpack.c.h.b16 %v163
    %v566 = vunpack.c.l.b16 %v164
    %v567 = vunpack.c.h.b16 %v164
    %v568 = vunpack.c.l.b16 %v165
    %v569 = vunpack.c.h.b16 %v165
    %v570 = vunpack.c.l.b16 %v166
    %v571 = vunpack.c.h.b16 %v166
    %v572 = vunpack.c.l.b16 %v167
    %v573 = vunpack.c.h.b16 %v167
    %v574 = vunpack.c.l.b16 %v168
    %v575 = vunpack.c.h.b16 %v168
    %v576 = vunpack.c.l.b16 %v169
    %v577 = vunpack.c.h.b16 %v169
    %v578 = vunpack.c.l.b16 %v170
    %v579 = vunpack.c.h.b16 %v170
    %v580 = vunpack.c.l.b16 %v171
    %v581 = vunpack.c.h.b16 %v171
    %v582 = vunpack.c.l.b16 %v172
    %v583 = vunpack.c.h.b16 %v172
    %v584 = vunpack.c.l.b16 %v173
    %v585 = vunpack.c.h.b16 %v173
    %v586 = vunpack.c.l.b16 %v174
    %v587 = vunpack.c.h.b16 %v174
    %v588 = vunpack.c.l.b16 %v175
    %v589 = vunpack.c.h.b16 %v175
    %v590 = vunpack.c.l.b16 %v176
    %v591 = vunpack.c.h.b16 %v176
    %v592 = vunpack.c.l.b16 %v177
    %v593 = vunpack.c.h.b16 %v177
    %v594 = vunpack.c.l.b16 %v178
    %v595 = vunpack.c.h.b16 %v178
    %v596 = vunpack.c.l.b16 %v179
    %v597 = vunpack.c.h.b16 %v179
    %v598 = vunpack.c.l.b16 %v180
    %v599 = vunpack.c.h.b16 %v180
    %v600 = vunpack.c.l.b16 %v181
    %v601 = vunpack.c.h.b16 %v181
    %v602 = vunpack.c.l.b16 %v182
    %v603 = vunpack.c.h.b16 %v182
    %v604 = vunpack.c.l.b16 %v183
    %v605 = vunpack.c.h.b16 %v183
    %v606 = vunpack.c.l.b16 %v184
    %v607 = vunpack.c.h.b16 %v184
    %v608 = vunpack.c.l.b16 %v185
    %v609 = vunpack.c.h.b16 %v185
    %v610 = vunpack.c.l.b16 %v186
    %v611 = vunpack.c.h.b16 %v186
    %v612 = vunpack.c.l.b16 %v187
    %v613 = vunpack.c.h.b16 %v187
    %v614 = vpack.c.b16 %v366, %v358
    %v615 = vpack.c.b16 %v367, %v359
    %v616 = vpack.c.b16 %v368, %v360
    %v617 = vpack.c.b16 %v369, %v361
    %v618 = vpack.c.b16 %v370, %v362
    %v619 = vpack.c.b16 %v371, %v363
    %v620 = vpack.c.b16 %v372, %v364
    %v621 = vpack.c.b16 %v373, %v365
    %v622 = vpack.c.b16 %v382, %v374
    %v623 = vpack.c.b16 %v383, %v375
    %v624 = vpack.c.b16 %v384, %v376
    %v625 = vpack.c.b16 %v385, %v377
    %v626 = vpack.c.b16 %v386, %v378
    %v627 = vpack.c.b16 %v387, %v379
    %v628 = vpack.c.b16 %v388, %v380
    %v629 = vpack.c.b16 %v389, %v381
    %v630 = vpack.c.b16 %v398, %v390
    %v631 = vpack.c.b16 %v399, %v391
    %v632 = vpack.c.b16 %v400, %v392
    %v633 = vpack.c.b16 %v401, %v393
    %v634 = vpack.c.b16 %v402, %v394
    %v635 = vpack.c.b16 %v403, %v395
    %v636 = vpack.c.b16 %v404, %v396
    %v637 = vpack.c.b16 %v405, %v397
    %v638 = vpack.c.b16 %v414, %v406
    %v639 = vpack.c.b16 %v415, %v407
    %v640 = vpack.c.b16 %v416, %v408
    %v641 = vpack.c.b16 %v417, %v409
    %v642 = vpack.c.b16 %v418, %v410
    %v643 = vpack.c.b16 %v419, %v411
    %v644 = vpack.c.b16 %v420, %v412
    %v645 = vpack.c.b16 %v421, %v413
    %v646 = vpack.c.b16 %v430, %v422
    %v647 = vpack.c.b16 %v431, %v423
    %v648 = vpack.c.b16 %v432, %v424
    %v649 = vpack.c.b16 %v433, %v425
    %v650 = vpack.c.b16 %v434, %v426
    %v651 = vpack.c.b16 %v435, %v427
    %v652 = vpack.c.b16 %v436, %v428
    %v653 = vpack.c.b16 %v437, %v429
    %v654 = vpack.c.b16 %v446, %v438
    %v655 = vpack.c.b16 %v447, %v439
    %v656 = vpack.c.b16 %v448, %v440
    %v657 = vpack.c.b16 %v449, %v441
    %v658 = vpack.c.b16 %v450, %v442
    %v659 = vpack.c.b16 %v451, %v443
    %v660 = vpack.c.b16 %v452, %v444
    %v661 = vpack.c.b16 %v453, %v445
    %v662 = vpack.c.b16 %v462, %v454
    %v663 = vpack.c.b16 %v463, %v455
    %v664 = vpack.c.b16 %v464, %v456
    %v665 = vpack.c.b16 %v465, %v457
    %v666 = vpack.c.b16 %v466, %v458
    %v667 = vpack.c.b16 %v467, %v459
    %v668 = vpack.c.b16 %v468, %v460
    %v669 = vpack.c.b16 %v469, %v461
    %v670 = vpack.c.b16 %v478, %v470
    %v671 = vpack.c.b16 %v479, %v471
    %v672 = vpack.c.b16 %v480, %v472
    %v673 = vpack.c.b16 %v481, %v473
    %v674 = vpack.c.b16 %v482, %v474
    %v675 = vpack.c.b16 %v483, %v475
    %v676 = vpack.c.b16 %v484, %v476
    %v677 = vpack.c.b16 %v485, %v477
    %v678 = vpack.c.b16 %v494, %v486
    %v679 = vpack.c.b16 %v495, %v487
    %v680 = vpack.c.b16 %v496, %v488
    %v681 = vpack.c.b16 %v497, %v489
    %v682 = vpack.c.b16 %v498, %v490
    %v683 = vpack.c.b16 %v499, %v491
    %v684 = vpack.c.b16 %v500, %v492
    %v685 = vpack.c.b16 %v501, %v493
    %v686 = vpack.c.b16 %v510, %v502
    %v687 = vpack.c.b16 %v511, %v503
    %v688 = vpack.c.b16 %v512, %v504
    %v689 = vpack.c.b16 %v513, %v505
    %v690 = vpack.c.b16 %v514, %v506
    %v691 = vpack.c.b16 %v515, %v507
    %v692 = vpack.c.b16 %v516, %v508
    %v693 = vpack.c.b16 %v517, %v509
    %v694 = vpack.c.b16 %v526, %v518
    %v695 = vpack.c.b16 %v527, %v519
    %v696 = vpack.c.b16 %v528, %v520
    %v697 = vpack.c.b16 %v529, %v521
    %v698 = vpack.c.b16 %v530, %v522
    %v699 = vpack.c.b16 %v531, %v523
    %v700 = vpack.c.b16 %v532, %v524
    %v701 = vpack.c.b16 %v533, %v525
    %v702 = vpack.c.b16 %v542, %v534
    %v703 = vpack.c.b16 %v543, %v535
    %v704 = vpack.c.b16 %v544, %v536
    %v705 = vpack.c.b16 %v545, %v537
    %v706 = vpack.c.b16 %v546, %v538
    %v707 = vpack.c.b16 %v547, %v539
    %v708 = vpack.c.b16 %v548, %v540
    %v709 = vpack.c.b16 %v549, %v541
    %v710 = vpack.c.b16 %v558, %v550
    %v711 = vpack.c.b16 %v559, %v551
    %v712 = vpack.c.b16 %v560, %v552
    %v713 = vpack.c.b16 %v561, %v553
    %v714 = vpack.c.b16 %v562, %v554
    %v715 = vpack.c.b16 %v563, %v555
    %v716 = vpack.c.b16 %v564, %v556
    %v717 = vpack.c.b16 %v565, %v557
    %v718 = vpack.c.b16 %v574, %v566
    %v719 = vpack.c.b16 %v575, %v567
    %v720 = vpack.c.b16 %v576, %v568
    %v721 = vpack.c.b16 %v577, %v569
    %v722 = vpack.c.b16 %v578, %v570
    %v723 = vpack.c.b16 %v579, %v571
    %v724 = vpack.c.b16 %v580, %v572
    %v725 = vpack.c.b16 %v581, %v573
    %v726 = vpack.c.b16 %v590, %v582
    %v727 = vpack.c.b16 %v591, %v583
    %v728 = vpack.c.b16 %v592, %v584
    %v729 = vpack.c.b16 %v593, %v585
    %v730 = vpack.c.b16 %v594, %v586
    %v731 = vpack.c.b16 %v595, %v587
    %v732 = vpack.c.b16 %v596, %v588
    %v733 = vpack.c.b16 %v597, %v589
    %v734 = vpack.c.b16 %v606, %v598
    %v735 = vpack.c.b16 %v607, %v599
    %v736 = vpack.c.b16 %v608, %v600
    %v737 = vpack.c.b16 %v609, %v601
    %v738 = vpack.c.b16 %v610, %v602
    %v739 = vpack.c.b16 %v611, %v603
    %v740 = vpack.c.b16 %v612, %v604
    %v741 = vpack.c.b16 %v613, %v605
    %870 = vmatprep.subr.bf16.mxu0 %v615
    %871 = vmatpush1.bf16.msra.mxu0 %v614
    %872 = vmatprep.subr.bf16.mxu0 %v623
    %873 = vmatpush1.bf16.msra.mxu0 %v622
    %874 = vmatprep.subr.bf16.mxu0 %v631
    %875 = vmatpush1.bf16.msra.mxu0 %v630
    %876 = vmatprep.subr.bf16.mxu0 %v639
    %877 = vmatpush1.bf16.msra.mxu0 %v638
    %878 = vmatprep.subr.bf16.mxu0 %v647
    %879 = vmatpush1.bf16.msra.mxu0 %v646
    %880 = vmatprep.subr.bf16.mxu0 %v655
    %881 = vmatpush1.bf16.msra.mxu0 %v654
    %882 = vmatprep.subr.bf16.mxu0 %v663
    %883 = vmatpush1.bf16.msra.mxu0 %v662
    %884 = vmatprep.subr.bf16.mxu0 %v671
    %885 = vmatpush1.bf16.msra.mxu0 %v670
    %886 = vmatprep.subr.bf16.mxu0 %v679
    %887 = vmatpush1.bf16.msra.mxu0 %v678
    %888 = vmatprep.subr.bf16.mxu0 %v687
    %889 = vmatpush1.bf16.msra.mxu0 %v686
    %890 = vmatprep.subr.bf16.mxu0 %v695
    %891 = vmatpush1.bf16.msra.mxu0 %v694
    %892 = vmatprep.subr.bf16.mxu0 %v703
    %893 = vmatpush1.bf16.msra.mxu0 %v702
    %894 = vmatprep.subr.bf16.mxu0 %v711
    %895 = vmatpush1.bf16.msra.mxu0 %v710
    %896 = vmatprep.subr.bf16.mxu0 %v719
    %897 = vmatpush1.bf16.msra.mxu0 %v718
    %898 = vmatprep.subr.bf16.mxu0 %v727
    %899 = vmatpush1.bf16.msra.mxu0 %v726
    %900 = vmatprep.subr.bf16.mxu0 %v735
    %901 = vmatpush1.bf16.msra.mxu0 %v734
    %902 = vmatprep.mubr.bf16.mxu0 %v59
    %903 = vmatmul.mubr.bf16.gmra.mrb[0].mxu0 %v58
    %v904 = vpop.f32.mrb[0].mxu0
    %v905 = vadd.f32 %v193, %v904
    %v906 = vpop.f32.mrb[0].mxu0
    %v907 = vadd.f32 %v197, %v906
    %v908 = vpop.f32.mrb[0].mxu0
    %v909 = vadd.f32 %v193, %v908
    %v910 = vpop.f32.mrb[0].mxu0
    %v911 = vadd.f32 %v197, %v910
    %912 = vdwg.mxu0
    %913 = vmatprep.subr.bf16.mxu0 %v617
    %914 = vmatpush1.bf16.msra.mxu0 %v616
    %915 = vmatprep.subr.bf16.mxu0 %v625
    %916 = vmatpush1.bf16.msra.mxu0 %v624
    %917 = vmatprep.subr.bf16.mxu0 %v633
    %918 = vmatpush1.bf16.msra.mxu0 %v632
    %919 = vmatprep.subr.bf16.mxu0 %v641
    %920 = vmatpush1.bf16.msra.mxu0 %v640
    %921 = vmatprep.subr.bf16.mxu0 %v649
    %922 = vmatpush1.bf16.msra.mxu0 %v648
    %923 = vmatprep.subr.bf16.mxu0 %v657
    %924 = vmatpush1.bf16.msra.mxu0 %v656
    %925 = vmatprep.subr.bf16.mxu0 %v665
    %926 = vmatpush1.bf16.msra.mxu0 %v664
    %927 = vmatprep.subr.bf16.mxu0 %v673
    %928 = vmatpush1.bf16.msra.mxu0 %v672
    %929 = vmatprep.subr.bf16.mxu0 %v681
    %930 = vmatpush1.bf16.msra.mxu0 %v680
    %931 = vmatprep.subr.bf16.mxu0 %v689
    %932 = vmatpush1.bf16.msra.mxu0 %v688
    %933 = vmatprep.subr.bf16.mxu0 %v697
    %934 = vmatpush1.bf16.msra.mxu0 %v696
    %935 = vmatprep.subr.bf16.mxu0 %v705
    %936 = vmatpush1.bf16.msra.mxu0 %v704
    %937 = vmatprep.subr.bf16.mxu0 %v713
    %938 = vmatpush1.bf16.msra.mxu0 %v712
    %939 = vmatprep.subr.bf16.mxu0 %v721
    %940 = vmatpush1.bf16.msra.mxu0 %v720
    %941 = vmatprep.subr.bf16.mxu0 %v729
    %942 = vmatpush1.bf16.msra.mxu0 %v728
    %943 = vmatprep.subr.bf16.mxu0 %v737
    %944 = vmatpush1.bf16.msra.mxu0 %v736
    %945 = vmatprep.mubr.bf16.mxu0 %v59
    %946 = vmatmul.mubr.bf16.gmra.mrb[0].mxu0 %v58
    %v947 = vpop.f32.mrb[0].mxu0
    %v948 = vadd.f32 %v201, %v947
    %v949 = vpop.f32.mrb[0].mxu0
    %v950 = vadd.f32 %v205, %v949
    %v951 = vpop.f32.mrb[0].mxu0
    %v952 = vadd.f32 %v201, %v951
    %v953 = vpop.f32.mrb[0].mxu0
    %v954 = vadd.f32 %v205, %v953
    %955 = vdwg.mxu0
    %956 = vmatprep.subr.bf16.mxu0 %v619
    %957 = vmatpush1.bf16.msra.mxu0 %v618
    %958 = vmatprep.subr.bf16.mxu0 %v627
    %959 = vmatpush1.bf16.msra.mxu0 %v626
    %960 = vmatprep.subr.bf16.mxu0 %v635
    %961 = vmatpush1.bf16.msra.mxu0 %v634
    %962 = vmatprep.subr.bf16.mxu0 %v643
    %963 = vmatpush1.bf16.msra.mxu0 %v642
    %964 = vmatprep.subr.bf16.mxu0 %v651
    %965 = vmatpush1.bf16.msra.mxu0 %v650
    %966 = vmatprep.subr.bf16.mxu0 %v659
    %967 = vmatpush1.bf16.msra.mxu0 %v658
    %968 = vmatprep.subr.bf16.mxu0 %v667
    %969 = vmatpush1.bf16.msra.mxu0 %v666
    %970 = vmatprep.subr.bf16.mxu0 %v675
    %971 = vmatpush1.bf16.msra.mxu0 %v674
    %972 = vmatprep.subr.bf16.mxu0 %v683
    %973 = vmatpush1.bf16.msra.mxu0 %v682
    %974 = vmatprep.subr.bf16.mxu0 %v691
    %975 = vmatpush1.bf16.msra.mxu0 %v690
    %976 = vmatprep.subr.bf16.mxu0 %v699
    %977 = vmatpush1.bf16.msra.mxu0 %v698
    %978 = vmatprep.subr.bf16.mxu0 %v707
    %979 = vmatpush1.bf16.msra.mxu0 %v706
    %980 = vmatprep.subr.bf16.mxu0 %v715
    %981 = vmatpush1.bf16.msra.mxu0 %v714
    %982 = vmatprep.subr.bf16.mxu0 %v723
    %983 = vmatpush1.bf16.msra.mxu0 %v722
    %984 = vmatprep.subr.bf16.mxu0 %v731
    %985 = vmatpush1.bf16.msra.mxu0 %v730
    %986 = vmatprep.subr.bf16.mxu0 %v739
    %987 = vmatpush1.bf16.msra.mxu0 %v738
    %988 = vmatprep.mubr.bf16.mxu0 %v59
    %989 = vmatmul.mubr.bf16.gmra.mrb[0].mxu0 %v58
    %v990 = vpop.f32.mrb[0].mxu0
    %v991 = vadd.f32 %v209, %v990
    %v992 = vpop.f32.mrb[0].mxu0
    %v993 = vadd.f32 %v213, %v992
    %v994 = vpop.f32.mrb[0].mxu0
    %v995 = vadd.f32 %v209, %v994
    %v996 = vpop.f32.mrb[0].mxu0
    %v997 = vadd.f32 %v213, %v996
    %998 = vdwg.mxu0
    %999 = vmatprep.subr.bf16.mxu0 %v621
    %1000 = vmatpush1.bf16.msra.mxu0 %v620
    %1001 = vmatprep.subr.bf16.mxu0 %v629
    %1002 = vmatpush1.bf16.msra.mxu0 %v628
    %1003 = vmatprep.subr.bf16.mxu0 %v637
    %1004 = vmatpush1.bf16.msra.mxu0 %v636
    %1005 = vmatprep.subr.bf16.mxu0 %v645
    %1006 = vmatpush1.bf16.msra.mxu0 %v644
    %1007 = vmatprep.subr.bf16.mxu0 %v653
    %1008 = vmatpush1.bf16.msra.mxu0 %v652
    %1009 = vmatprep.subr.bf16.mxu0 %v661
    %1010 = vmatpush1.bf16.msra.mxu0 %v660
    %1011 = vmatprep.subr.bf16.mxu0 %v669
    %1012 = vmatpush1.bf16.msra.mxu0 %v668
    %1013 = vmatprep.subr.bf16.mxu0 %v677
    %1014 = vmatpush1.bf16.msra.mxu0 %v676
    %1015 = vmatprep.subr.bf16.mxu0 %v685
    %1016 = vmatpush1.bf16.msra.mxu0 %v684
    %1017 = vmatprep.subr.bf16.mxu0 %v693
    %1018 = vmatpush1.bf16.msra.mxu0 %v692
    %1019 = vmatprep.subr.bf16.mxu0 %v701
    %1020 = vmatpush1.bf16.msra.mxu0 %v700
    %1021 = vmatprep.subr.bf16.mxu0 %v709
    %1022 = vmatpush1.bf16.msra.mxu0 %v708
    %1023 = vmatprep.subr.bf16.mxu0 %v717
    %1024 = vmatpush1.bf16.msra.mxu0 %v716
    %1025 = vmatprep.subr.bf16.mxu0 %v725
    %1026 = vmatpush1.bf16.msra.mxu0 %v724
    %1027 = vmatprep.subr.bf16.mxu0 %v733
    %1028 = vmatpush1.bf16.msra.mxu0 %v732
    %1029 = vmatprep.subr.bf16.mxu0 %v741
    %1030 = vmatpush1.bf16.msra.mxu0 %v740
    %1031 = vmatprep.mubr.bf16.mxu0 %v59
    %1032 = vmatmul.mubr.bf16.gmra.mrb[0].mxu0 %v58
    %v1033 = vpop.f32.mrb[0].mxu0
    %v1034 = vadd.f32 %v217, %v1033
    %v1035 = vpop.f32.mrb[0].mxu0
    %v1036 = vadd.f32 %v221, %v1035
    %v1037 = vpop.f32.mrb[0].mxu0
    %v1038 = vadd.f32 %v217, %v1037
    %v1039 = vpop.f32.mrb[0].mxu0
    %v1040 = vadd.f32 %v221, %v1039
    %1041 = vdwg.mxu0
    %1042 = vst [vmem:[#allocation8] sm:$0xff] %v905
    %1043 = vst [vmem:[#allocation8 + $0x8] sm:$0xff] %v907
    %1044 = vst [vmem:[#allocation8 + $0x10] sm:$0xff] %v948
    %1045 = vst [vmem:[#allocation8 + $0x18] sm:$0xff] %v950
    %1046 = vst [vmem:[#allocation8 + $0x20] sm:$0xff] %v991
    %1047 = vst [vmem:[#allocation8 + $0x28] sm:$0xff] %v993
    %1048 = vst [vmem:[#allocation8 + $0x30] sm:$0xff] %v1034
    %1049 = vst [vmem:[#allocation8 + $0x38] sm:$0xff] %v1036
    %1050 = vst [vmem:[#allocation8 + $0x40] sm:$0xff] %v909
    %1051 = vst [vmem:[#allocation8 + $0x48] sm:$0xff] %v911
    %1052 = vst [vmem:[#allocation8 + $0x50] sm:$0xff] %v952
    %1053 = vst [vmem:[#allocation8 + $0x58] sm:$0xff] %v954
    %1054 = vst [vmem:[#allocation8 + $0x60] sm:$0xff] %v995
    %1055 = vst [vmem:[#allocation8 + $0x68] sm:$0xff] %v997
    %1056 = vst [vmem:[#allocation8 + $0x70] sm:$0xff] %v1038
    %1057 = vst [vmem:[#allocation8 + $0x78] sm:$0xff] %v1040
    // Predicated region
    $region26: #{tpu_custom_call.1} parent=1 // pred_check
      _
    $region27: #{tpu_custom_call.1} parent=1 // pred_check_branch
      %1059 = sbr.rel (0) target = $region29
    $region28: #{tpu_custom_call.1} parent=1 // pred_region
      %s1061 = ssub.s32 2048, 2048
      %1062 = vsyncadd [#allocation4], %s1061
      %s1063 = sshll.u32 [#allocation8], 4
      %s1064 = int_to_ptr.vmem [resolvable:$true] %s1063
      %1069 = dma.vmem_to_hbm [thread:$0]  %s1064, 2048, %s3, [#allocation4], 1024, 1024, 64
    $region29: #{tpu_custom_call.1} parent=1 // pred_fallthru
      _
    // Predicated region
    $region30: #{tpu_custom_call.1} parent=1 // pred_check
      _
    $region31: #{tpu_custom_call.1} parent=1 // pred_check_branch
      %1071 = sbr.rel (0) target = $region33
    $region32: #{tpu_custom_call.1} parent=1 // pred_region
      %1072 = dma.done [#allocation4], 2048
    $region33: #{tpu_custom_call.1} parent=1 // pred_fallthru
      _
    %1073 = vsyncpa [#allocation3], 1
    %1074 = vsyncpa [#allocation6], 1
    %1075 = vsyncpa [#allocation4], 1

</llo_original>
